<compile_context>
chip_gen: v6e
topology: v6e:2x2x1
jax: 0.10.0
libtpu: 0.0.40
codegen_flags: <defaults>
</compile_context>

<pallas_src>
import jax
import jax.numpy as jnp
from jax.experimental import pallas as pl
from jax.experimental.pallas import tpu as pltpu

EPS = 0.01

# Target VMEM working set (pipelined logits blocks + in-kernel f32 temps).
# Kept well under the 32 MiB scoped limit requested below so the same sizing
# works on v5e/v6e (128 MiB physical) and v7x (64 MiB physical).
_VMEM_WORKING_BYTES = 24 * 1024 * 1024


def _unlikelihood_kernel(x_ref, t_ref, o_ref):
    """x_ref: (RT, C) logits, t_ref: (RT, 1) int32 ids, o_ref: (RT, 1) f32."""
    x = x_ref[...].astype(jnp.float32)          # widen in-kernel (bf16 path)
    t = t_ref[...]                              # (RT, 1) int32

    # One-hot row mask for the target column (no dynamic gather on TPU).
    col = jax.lax.broadcasted_iota(jnp.int32, x.shape, 1)
    hit = col == t                              # (RT, C) bool

    # Numerically stable softmax pieces, reduced over the class (lane) axis.
    m = jnp.max(x, axis=-1, keepdims=True)                               # row max
    x_t = jnp.max(jnp.where(hit, x, -jnp.inf), axis=-1, keepdims=True)   # target logit
    den = jnp.sum(jnp.exp(x - m), axis=-1, keepdims=True)                # softmax denom

    p = jnp.exp(x_t - m) / den                  # softmax prob of the target class
    p = jnp.clip(p, 0.0, 1.0 - EPS)
    loss = jnp.clip(-jnp.log(1.0 - p), 0.0, 10.0)

    # TODO(synk): a lane-dense (1, row_tile) output slab would avoid the masked
    # column stores, but needs a sublane->lane relayout of the per-row loss;
    # the column writeback is <1% of HBM traffic at these block sizes, so the
    # known-good column layout is kept.
    o_ref[...] = loss.astype(o_ref.dtype)


def _pick_row_tile(n_rows, n_classes, itemsize):
    """Pick a row tile that fills the VMEM budget with multi-MiB DMA steps."""
    # Per-row VMEM cost: 2 pipelined logits rows (HBM dtype) + ~2 rows of f32
    # in-kernel working set + lane-padded (row, 1) target/output tiles.
    per_row = n_classes * (2 * itemsize + 2 * 4) + 4 * 128 * 4
    rt = max(16, _VMEM_WORKING_BYTES // per_row)
    if rt >= 128:
        rt = min(4096, (rt // 128) * 128)       # lane/sublane friendly
    else:
        rt = (rt // 16) * 16                    # bf16 sublane-packing floor
    # Keep the "parallel" row grid at >= 2 steps when N allows it, so v7x can
    # shard row blocks across its two TensorCores.
    if n_rows <= rt and n_rows > 32:
        half = -(-n_rows // 2)
        gran = 128 if half >= 128 else 16
        rt = max(gran, (half // gran) * gran)
    return int(rt)


def unlikelihood_loss(logits, target, *, row_tile=None):
    """logits: (N, C) float (f32 or bf16); target: (N,) int. Returns (N,) f32."""
    N, C = logits.shape
    itemsize = jnp.dtype(logits.dtype).itemsize
    if row_tile is None:
        row_tile = _pick_row_tile(N, C, itemsize)
    num_tiles = pl.cdiv(N, row_tile)            # ragged trailing block is OK

    target_col = target.reshape(N, 1).astype(jnp.int32)

    # Explicit VMEM budget: v5e's scoped default (16 MiB) is too small for the
    # tuned tiles; cap at 48 MiB so it also fits v7x's 64 MiB physical VMEM.
    est = (2 * row_tile * C * itemsize          # double-buffered logits blocks
           + 2 * row_tile * C * 4               # in-kernel f32 working set
           + 4 * row_tile * 128 * 4)            # lane-padded (RT, 1) target/out tiles
    vmem_limit = int(min(48 * 2**20, max(32 * 2**20, int(est * 1.3))))

    # TODO(synk): for very large C (vocab >= 64k) add a second "arbitrary" grid
    # axis over C with an online-softmax accumulator so the block stays bounded
    # on v7x's 64 MiB VMEM; not needed at these sizes.
    out = pl.pallas_call(
        _unlikelihood_kernel,
        out_shape=jax.ShapeDtypeStruct((N, 1), jnp.float32),
        grid_spec=pltpu.PrefetchScalarGridSpec(
            num_scalar_prefetch=0,
            grid=(num_tiles,),
            in_specs=[
                pl.BlockSpec((row_tile, C), lambda i: (i, 0)),
                # TODO(synk): the (row_tile, 1) target column pads to 128 lanes
                # in VMEM; a lane-dense target needs the same relayout as the
                # output and is negligible next to the logits traffic.
                pl.BlockSpec((row_tile, 1), lambda i: (i, 0)),
            ],
            out_specs=pl.BlockSpec((row_tile, 1), lambda i: (i, 0)),
        ),
        compiler_params=pltpu.CompilerParams(
            dimension_semantics=("parallel",),
            vmem_limit_bytes=vmem_limit,
        ),
    )(logits, target_col)

    return out[:, 0]   # matches torch .squeeze()


def _reference(logits, target):
    probs = jax.nn.softmax(logits.astype(jnp.float32), axis=1)
    p = jnp.take_along_axis(probs, target[:, None].astype(jnp.int32), axis=1)
    p = jnp.clip(p, 0.0, 1.0 - EPS)
    return jnp.clip(-jnp.log(1.0 - p), 0.0, 10.0)[:, 0]


if __name__ == "__main__":
    key = jax.random.PRNGKey(0)
    k1, k2 = jax.random.split(key)

    # Small, deliberately ragged shapes: N=300 is not a multiple of the chosen
    # row tile (128), exercising the partial trailing block and grid >= 2.
    N, C = 300, 256
    logits_f32 = jax.random.normal(k1, (N, C), dtype=jnp.float32) * 3.0
    target = jax.random.randint(k2, (N,), 0, C, dtype=jnp.int32)

    # f32 logits path
    loss = jax.block_until_ready(unlikelihood_loss(logits_f32, target))
    ref = _reference(logits_f32, target)
    assert loss.shape == (N,)
    assert jnp.allclose(loss, ref, atol=1e-5, rtol=1e-4), (loss, ref)

    # bf16 logits path (halves HBM traffic; widened to f32 inside the kernel)
    logits_bf16 = logits_f32.astype(jnp.bfloat16)
    loss_bf16 = jax.block_until_ready(unlikelihood_loss(logits_bf16, target))
    ref_bf16 = _reference(logits_bf16, target)
    assert loss_bf16.shape == (N,)
    assert jnp.allclose(loss_bf16, ref_bf16, atol=1e-5, rtol=1e-4), (loss_bf16, ref_bf16)

    print("KERNEL_OK")
</pallas_src>

<mosaic_0001>
module attributes {stable_mosaic.version = 11 : i64} {
  func.func @_unlikelihood_kernel(%arg0: i32, %arg1: memref<128x256xf32, #tpu.memory_space<vmem>>, %arg2: memref<128x1xi32, #tpu.memory_space<vmem>>, %arg3: memref<128x1xf32, #tpu.memory_space<vmem>>) attributes {dimension_semantics = [#tpu.dimension_semantics<parallel>], iteration_bounds = array<i64: 3>, scalar_prefetch = 0 : i64, scratch_operands = 0 : i64, tpu.core_type = #tpu.core_type<tc>, window_params = [{transform_indices = @transform_0, window_bounds = array<i64: 128, 256>}, {transform_indices = @transform_1, window_bounds = array<i64: 128, 1>}, {transform_indices = @transform_2, window_bounds = array<i64: 128, 1>}]} {
    %c0 = arith.constant 0 : index
    %c0_0 = arith.constant 0 : index
    %0 = vector.load %arg1[%c0, %c0_0] : memref<128x256xf32, #tpu.memory_space<vmem>>, vector<128x256xf32>
    %c0_1 = arith.constant 0 : index
    %c0_2 = arith.constant 0 : index
    %1 = vector.load %arg2[%c0_1, %c0_2] : memref<128x1xi32, #tpu.memory_space<vmem>>, vector<128x1xi32>
    %2 = tpu.iota {dimensions = array<i32: 1>} : vector<128x256xi32>
    %3 = vector.broadcast %1 : vector<128x1xi32> to vector<128x256xi32>
    %4 = arith.cmpi eq, %2, %3 : vector<128x256xi32>
    %cst = arith.constant dense<0xFF800000> : vector<128xf32>
    %5 = vector.multi_reduction <maximumf>, %0, %cst [1] : vector<128x256xf32> to vector<128xf32>
    %6 = vector.shape_cast %5 : vector<128xf32> to vector<128x1xf32>
    %cst_3 = arith.constant 0xFF800000 : f32
    %7 = vector.broadcast %cst_3 : f32 to vector<128x256xf32>
    %8 = arith.select %4, %0, %7 : vector<128x256xi1>, vector<128x256xf32>
    %cst_4 = arith.constant dense<0xFF800000> : vector<128xf32>
    %9 = vector.multi_reduction <maximumf>, %8, %cst_4 [1] : vector<128x256xf32> to vector<128xf32>
    %10 = vector.shape_cast %9 : vector<128xf32> to vector<128x1xf32>
    %11 = vector.broadcast %6 : vector<128x1xf32> to vector<128x256xf32>
    %12 = arith.subf %0, %11 : vector<128x256xf32>
    %13 = math.exp %12 : vector<128x256xf32>
    %cst_5 = arith.constant dense<0.000000e+00> : vector<128xf32>
    %14 = vector.multi_reduction <add>, %13, %cst_5 [1] : vector<128x256xf32> to vector<128xf32>
    %15 = vector.shape_cast %14 : vector<128xf32> to vector<128x1xf32>
    %16 = arith.subf %10, %6 : vector<128x1xf32>
    %17 = math.exp %16 : vector<128x1xf32>
    %18 = arith.divf %17, %15 : vector<128x1xf32>
    %cst_6 = arith.constant 0.000000e+00 : f32
    %cst_7 = arith.constant 9.900000e-01 : f32
    %19 = vector.broadcast %cst_6 : f32 to vector<128x1xf32>
    %20 = arith.maximumf %19, %18 : vector<128x1xf32>
    %21 = vector.broadcast %cst_7 : f32 to vector<128x1xf32>
    %22 = arith.minimumf %21, %20 : vector<128x1xf32>
    %cst_8 = arith.constant 1.000000e+00 : f32
    %23 = vector.broadcast %cst_8 : f32 to vector<128x1xf32>
    %24 = arith.subf %23, %22 : vector<128x1xf32>
    %25 = math.log %24 : vector<128x1xf32>
    %cst_9 = arith.constant 0.000000e+00 : f32
    %26 = vector.broadcast %cst_9 : f32 to vector<128x1xf32>
    %27 = arith.subf %26, %25 : vector<128x1xf32>
    %cst_10 = arith.constant 0.000000e+00 : f32
    %cst_11 = arith.constant 1.000000e+01 : f32
    %28 = vector.broadcast %cst_10 : f32 to vector<128x1xf32>
    %29 = arith.maximumf %28, %27 : vector<128x1xf32>
    %30 = vector.broadcast %cst_11 : f32 to vector<128x1xf32>
    %31 = arith.minimumf %30, %29 : vector<128x1xf32>
    %c0_12 = arith.constant 0 : index
    %c0_13 = arith.constant 0 : index
    %32 = vector.load %arg3[%c0_12, %c0_13] : memref<128x1xf32, #tpu.memory_space<vmem>>, vector<128x1xf32>
    tpu.vector_store %arg3[%c0_12, %c0_13], %31 {strides = array<i32>} : memref<128x1xf32, #tpu.memory_space<vmem>>, vector<128x1xf32>,
    return
  }
  func.func @transform_0(%arg0: i32) -> (i32, i32) {
    %c0_i32 = arith.constant 0 : i32
    %c0_i32_0 = arith.constant 0 : i32
    return %arg0, %c0_i32 : i32, i32
  }
  func.func @transform_1(%arg0: i32) -> (i32, i32) {
    %c0_i32 = arith.constant 0 : i32
    %c0_i32_0 = arith.constant 0 : i32
    return %arg0, %c0_i32 : i32, i32
  }
  func.func @transform_2(%arg0: i32) -> (i32, i32) {
    %c0_i32 = arith.constant 0 : i32
    %c0_i32_0 = arith.constant 0 : i32
    return %arg0, %c0_i32 : i32, i32
  }
}

</mosaic_0001>

<llo_original>
// kernel: tpu_custom_call.1
$region0: #{tpu_custom_call.1}
  #allocation0 [shape = 'u32[]', space=smem, size = 0x4, offset = 0x4, fixed_abs, tag = 'smem constant byte address 0x4 - core index']
  #allocation1 [shape = 'u32[144,128]{1,0:T(1,128)}', space=vmem, size = 0x12000, scoped, tag = 'internal scratch']
  %s0 = inlined_call_operand.hbm [shape: f32[300,256], index: 0, kind: input, shape index: {}]
  %s1 = inlined_call_operand.vmem [shape: s32[300,1], index: 1, kind: input, shape index: {}]
  %s2 = inlined_call_operand.vmem [shape: f32[300,1], index: 2, kind: output, shape index: {}]
  %s3 = sld [smem:[#allocation0]]
  $region93: #{tpu_custom_call.1} parent=0
    _
  %s5 = ssub.s32 1, %s3
  %s6 = scalar_select 0, %s5, %s3
  $region1: #{tpu_custom_call.1} parent=0
    #allocation2 [shape = 'u8[262144]{0}', space=vmem, size = 0x40000, scoped, tag = 'input window, operand 0']
    #allocation3 [shape = 's32[2]{0}', space=sflag, size = 0x8, scoped, tag = 'scoped memory for tpu_custom_call.1']
    #allocation4 [shape = 'u8[131072]{0}', space=vmem, size = 0x20000, scoped, tag = 'output window, operand 0']
    %7 = vsyncpa [#allocation3], 0
    %s8 = scalar_lea.sflag [#allocation3], 1
    %9 = vsyncpa %s8, 0
    loop: start=0, step=1, limit=5
    $region2: #{tpu_custom_call.1} parent=1 // loop_pre_header
      _
    $region3: #{tpu_custom_call.1} parent=1 // loop_header
      %s11 = sphi 0, %s15
      %p12 = scmp.ge.s32.totalorder %s11, 5
      %s21 = sphi 0, %s23
      %s24 = sphi 0, %s21
      %s25 = sphi 0, %s24
      %s41 = sphi 0, %s25
      %s47 = sphi 0, %s49
      %s50 = sphi 0, %s47
      %s51 = sphi 0, %s50
      %s67 = sphi 0, %s51
      %s73 = sphi 0, %s75
      %s76 = sphi 0, %s73
      %s77 = sphi 0, %s76
      %s93 = sphi 0, %s77
    $region4: #{tpu_custom_call.1} parent=1 // loop_header_branch
      %14 = sbr.rel (%p12) target = $region8
    $region5: #{tpu_custom_call.1} parent=1 // loop_body
      %s16 = ssub.s32 %s11, 1
      %s17 = ssub.s32 %s11, 2
      %s18 = sadd.s32 %s11, 1
      %s19 = ssub.s32 %s11, %s18
      %p20 = scmp.eq.s32.totalorder %s19, 0
      %s22 = sadd.s32 %s21, 1
      %s23 = scalar_select %p20, %s21, %s22
      %p26 = pneg %p20
      %p27 = scmp.eq.s32.totalorder %s11, 2
      %p28 = por %p26, %p27
      %p29 = scmp.ne.s32.totalorder %s21, %s24
      %p30 = scmp.eq.s32.totalorder %s11, 0
      %p31 = por %p29, %p30
      %p32 = scmp.ne.s32.totalorder %s21, %s24
      %p33 = scmp.eq.s32.totalorder %s16, 2
      %p34 = por %p32, %p33
      %p35 = scmp.ne.s32.totalorder %s24, %s25
      %p36 = scmp.eq.s32.totalorder %s16, 0
      %p37 = por %p35, %p36
      %p38 = scmp.ne.s32.totalorder %s24, %s25
      %p39 = scmp.eq.s32.totalorder %s17, 2
      %p40 = por %p38, %p39
      %p42 = scmp.ne.s32.totalorder %s25, %s41
      %p43 = scmp.eq.s32.totalorder %s17, 0
      %p44 = por %p42, %p43
      %s45 = ssub.s32 %s11, %s18
      %p46 = scmp.eq.s32.totalorder %s45, 0
      %s48 = sadd.s32 %s47, 1
      %s49 = scalar_select %p46, %s47, %s48
      %p52 = pneg %p46
      %p53 = scmp.eq.s32.totalorder %s11, 2
      %p54 = por %p52, %p53
      %p55 = scmp.ne.s32.totalorder %s47, %s50
      %p56 = scmp.eq.s32.totalorder %s11, 0
      %p57 = por %p55, %p56
      %p58 = scmp.ne.s32.totalorder %s47, %s50
      %p59 = scmp.eq.s32.totalorder %s16, 2
      %p60 = por %p58, %p59
      %p61 = scmp.ne.s32.totalorder %s50, %s51
      %p62 = scmp.eq.s32.totalorder %s16, 0
      %p63 = por %p61, %p62
      %p64 = scmp.ne.s32.totalorder %s50, %s51
      %p65 = scmp.eq.s32.totalorder %s17, 2
      %p66 = por %p64, %p65
      %p68 = scmp.ne.s32.totalorder %s51, %s67
      %p69 = scmp.eq.s32.totalorder %s17, 0
      %p70 = por %p68, %p69
      %s71 = ssub.s32 %s11, %s18
      %p72 = scmp.eq.s32.totalorder %s71, 0
      %s74 = sadd.s32 %s73, 1
      %s75 = scalar_select %p72, %s73, %s74
      %p78 = pneg %p72
      %p79 = scmp.eq.s32.totalorder %s11, 2
      %p80 = por %p78, %p79
      %p81 = scmp.ne.s32.totalorder %s73, %s76
      %p82 = scmp.eq.s32.totalorder %s11, 0
      %p83 = por %p81, %p82
      %p84 = scmp.ne.s32.totalorder %s73, %s76
      %p85 = scmp.eq.s32.totalorder %s16, 2
      %p86 = por %p84, %p85
      %p87 = scmp.ne.s32.totalorder %s76, %s77
      %p88 = scmp.eq.s32.totalorder %s16, 0
      %p89 = por %p87, %p88
      %p90 = scmp.ne.s32.totalorder %s76, %s77
      %p91 = scmp.eq.s32.totalorder %s17, 2
      %p92 = por %p90, %p91
      %p94 = scmp.ne.s32.totalorder %s77, %s93
      %p95 = scmp.eq.s32.totalorder %s17, 0
      %p96 = por %p94, %p95
      %p97 = scmp.le.s32.totalorder 1, %s11
      %p98 = scmp.lt.s32.totalorder %s11, 4
      %p99 = pnand %p97, %p98
      %p100 = pneg %p99
      // Predicated region
      $region9: #{tpu_custom_call.1} parent=5 // pred_check
        _
      $region10: #{tpu_custom_call.1} parent=5 // pred_check_branch
        %102 = sbr.rel (%p99) target = $region12
      $region11: #{tpu_custom_call.1} parent=5 // pred_region
        %s103 = ssub.s32 %s11, 1
      $region12: #{tpu_custom_call.1} parent=5 // pred_fallthru
        _
      %p104 = scmp.lt.s32.totalorder %s11, 3
      // Predicated region
      $region13: #{tpu_custom_call.1} parent=5 // pred_check
        %p105 = pneg %p104
      $region14: #{tpu_custom_call.1} parent=5 // pred_check_branch
        %107 = sbr.rel (%p105) target = $region16
      $region15: #{tpu_custom_call.1} parent=5 // pred_region
        // Predicated region
        $region17: #{tpu_custom_call.1} parent=15 // pred_check
          %p108 = pneg %p31
        $region18: #{tpu_custom_call.1} parent=15 // pred_check_branch
          %110 = sbr.rel (%p108) target = $region20
        $region19: #{tpu_custom_call.1} parent=15 // pred_region
          %s111 = sand.u32 %s21, 1
          %s112 = scalar_lea.sflag [#allocation3], %s111
          %s113 = sand.u32 %s21, 1
          %s114 = smul.addr %s113, 256
          %s115 = scalar_lea.vmem [#allocation2], %s114
          %s116 = smul.u32 16, %s11
          %s117 = ssub.s32 38, %s116
          %p118 = scmp.lt.s32.totalorder %s117, 16
          %s119 = scalar_select %p118, %s117, 16
          %s120 = smul.u32 128, %s119
          %s121 = smul.u32 %s120, 2
          %s123 = ssub.s32 4096, %s121
          %124 = vsyncadd %s112, %s123
          %p125 = scmp.ne.s32.totalorder 0, %s121
          %s126 = smul.addr %s116, 2
          %s127 = smul.addr %s126, 128
          %s128 = scalar_lea.hbm %s0, %s127
          %s129 = smul.u32 16, %s119
          %s130 = sshll.u32 %s115, 4
          %s131 = int_to_ptr.vmem [resolvable:$true] %s130
          %s132 = sshll.u32 %s129, 4
          %136 = dma.hbm_to_vmem [thread:$0]  (%p125), %s128, %s132, %s131, %s112, 256, 256, 16
        $region20: #{tpu_custom_call.1} parent=15 // pred_fallthru
          _
        // Predicated region
        $region21: #{tpu_custom_call.1} parent=15 // pred_check
          %p137 = pneg %p57
        $region22: #{tpu_custom_call.1} parent=15 // pred_check_branch
          %139 = sbr.rel (%p137) target = $region24
        $region23: #{tpu_custom_call.1} parent=15 // pred_region
          %s140 = smul.u32 16, %s11
          %s141 = ssub.s32 38, %s140
          %p142 = scmp.lt.s32.totalorder %s141, 16
          %s143 = scalar_select %p142, %s141, 16
          %s144 = smul.u32 128, %s143
          %p145 = scmp.lt.s32.totalorder %s140, 37
          %s146 = scalar_select %p145, %s140, 37
          %s147 = smul.addr %s146, 8
          %s148 = scalar_lea.vmem %s1, %s147
          %s149 = smul.u32 16, %s11
          %s150 = ssub.s32 38, %s149
          %p151 = scmp.lt.s32.totalorder %s150, 16
          %s152 = scalar_select %p151, %s150, 16
          %s153 = smul.u32 128, %s152
        $region24: #{tpu_custom_call.1} parent=15 // pred_fallthru
          _
      $region16: #{tpu_custom_call.1} parent=5 // pred_fallthru
        _
      %p154 = scmp.le.s32.totalorder 1, %s11
      %p155 = scmp.lt.s32.totalorder %s11, 4
      %p156 = pnand %p154, %p155
      %p157 = pneg %p156
      // Predicated region
      $region25: #{tpu_custom_call.1} parent=5 // pred_check
        _
      $region26: #{tpu_custom_call.1} parent=5 // pred_check_branch
        %159 = sbr.rel (%p156) target = $region28
      $region27: #{tpu_custom_call.1} parent=5 // pred_region
        %s160 = ssub.s32 %s11, 1
        %s161 = sand.u32 %s24, 1
        %s162 = scalar_lea.sflag [#allocation3], %s161
        %s163 = sand.u32 %s24, 1
        %s164 = smul.addr %s163, 256
        %s165 = scalar_lea.vmem [#allocation2], %s164
        // Predicated region
        $region29: #{tpu_custom_call.1} parent=27 // pred_check
          %p166 = pneg %p37
        $region30: #{tpu_custom_call.1} parent=27 // pred_check_branch
          %168 = sbr.rel (%p166) target = $region32
        $region31: #{tpu_custom_call.1} parent=27 // pred_region
          %169 = dma.done %s162, 4096
        $region32: #{tpu_custom_call.1} parent=27 // pred_fallthru
          _
        %s170 = sand.u32 %s24, 1
        %s171 = scalar_lea.sflag [#allocation3], %s170
        %s172 = sand.u32 %s24, 1
        %s173 = smul.addr %s172, 256
        %s174 = scalar_lea.vmem [#allocation2], %s173
        %p175 = pneg %p37
        %p176 = pneg %p34
        %s177 = smul.u32 16, %s16
        %s178 = ssub.s32 38, %s177
        %p179 = scmp.lt.s32.totalorder %s178, 16
        %s180 = scalar_select %p179, %s178, 16
        %s181 = smul.u32 128, %s180
        %p182 = scmp.lt.s32.totalorder %s177, 37
        %s183 = scalar_select %p182, %s177, 37
        %s184 = smul.addr %s183, 8
        %s185 = scalar_lea.vmem %s1, %s184
        %p186 = pneg %p63
        %p187 = pneg %p60
        %p188 = pneg %p89
        %p189 = pneg %p86
        %s190 = sand.u32 %s76, 1
        %s191 = sand.u32 %s76, 1
        %s192 = smul.addr %s191, 128
        %s193 = scalar_lea.vmem [#allocation4], %s192
        %s194 = smul.u32 16, %s16
        %s195 = ssub.s32 38, %s194
        %p196 = scmp.lt.s32.totalorder %s195, 16
        %s197 = scalar_select %p196, %s195, 16
        %s198 = smul.u32 128, %s197
        %s199 = smul.u32 %s198, 2
        %s200 = smul.u32 16, %s16
        %s201 = ssub.s32 38, %s200
        %p202 = scmp.lt.s32.totalorder %s201, 16
        %s203 = scalar_select %p202, %s201, 16
        %s204 = smul.u32 128, %s203
        %p205 = scmp.lt.s32.totalorder %s200, 37
        %s206 = scalar_select %p205, %s200, 37
        %s207 = smul.addr %s206, 8
        %s208 = scalar_lea.vmem %s1, %s207
        %s209 = smul.u32 16, %s16
        %s210 = ssub.s32 38, %s209
        %p211 = scmp.lt.s32.totalorder %s210, 16
        %s212 = scalar_select %p211, %s210, 16
        %s213 = smul.u32 128, %s212
        %s214 = smul.u32 16, %s16
        %s215 = ssub.s32 38, %s214
        %p216 = scmp.lt.s32.totalorder %s215, 16
        %s217 = scalar_select %p216, %s215, 16
        %s218 = smul.u32 128, %s217
        %v219 = vld [vmem:[%s165] sm:$0xff]
        %v220 = vld [vmem:[%s165 + $0x8] sm:$0xff]
        %v221 = vld [vmem:[%s165 + $0x10] sm:$0xff]
        %v222 = vld [vmem:[%s165 + $0x18] sm:$0xff]
        %v223 = vld [vmem:[%s165 + $0x20] sm:$0xff]
        %v224 = vld [vmem:[%s165 + $0x28] sm:$0xff]
        %v225 = vld [vmem:[%s165 + $0x30] sm:$0xff]
        %v226 = vld [vmem:[%s165 + $0x38] sm:$0xff]
        %v227 = vld [vmem:[%s165 + $0x40] sm:$0xff]
        %v228 = vld [vmem:[%s165 + $0x48] sm:$0xff]
        %v229 = vld [vmem:[%s165 + $0x50] sm:$0xff]
        %v230 = vld [vmem:[%s165 + $0x58] sm:$0xff]
        %v231 = vld [vmem:[%s165 + $0x60] sm:$0xff]
        %v232 = vld [vmem:[%s165 + $0x68] sm:$0xff]
        %v233 = vld [vmem:[%s165 + $0x70] sm:$0xff]
        %v234 = vld [vmem:[%s165 + $0x78] sm:$0xff]
        %v235 = vld [vmem:[%s165 + $0x80] sm:$0xff]
        %v236 = vld [vmem:[%s165 + $0x88] sm:$0xff]
        %v237 = vld [vmem:[%s165 + $0x90] sm:$0xff]
        %v238 = vld [vmem:[%s165 + $0x98] sm:$0xff]
        %v239 = vld [vmem:[%s165 + $0xa0] sm:$0xff]
        %v240 = vld [vmem:[%s165 + $0xa8] sm:$0xff]
        %v241 = vld [vmem:[%s165 + $0xb0] sm:$0xff]
        %v242 = vld [vmem:[%s165 + $0xb8] sm:$0xff]
        %v243 = vld [vmem:[%s165 + $0xc0] sm:$0xff]
        %v244 = vld [vmem:[%s165 + $0xc8] sm:$0xff]
        %v245 = vld [vmem:[%s165 + $0xd0] sm:$0xff]
        %v246 = vld [vmem:[%s165 + $0xd8] sm:$0xff]
        %v247 = vld [vmem:[%s165 + $0xe0] sm:$0xff]
        %v248 = vld [vmem:[%s165 + $0xe8] sm:$0xff]
        %v249 = vld [vmem:[%s165 + $0xf0] sm:$0xff]
        %v250 = vld [vmem:[%s165 + $0xf8] sm:$0xff]
        %v251 = vld [vmem:[%s208] sm:$0xff]
        %v252 = vld [vmem:[%s208 + $0x8] sm:$0xff]
        %v253 = vld [vmem:[%s208 + $0x10] sm:$0xff]
        %v254 = vld [vmem:[%s208 + $0x18] sm:$0xff]
        %v255 = vld [vmem:[%s208 + $0x20] sm:$0xff]
        %v256 = vld [vmem:[%s208 + $0x28] sm:$0xff]
        %v257 = vld [vmem:[%s208 + $0x30] sm:$0xff]
        %v258 = vld [vmem:[%s208 + $0x38] sm:$0xff]
        %v259 = vld [vmem:[%s208 + $0x40] sm:$0xff]
        %v260 = vld [vmem:[%s208 + $0x48] sm:$0xff]
        %v261 = vld [vmem:[%s208 + $0x50] sm:$0xff]
        %v262 = vld [vmem:[%s208 + $0x58] sm:$0xff]
        %v263 = vld [vmem:[%s208 + $0x60] sm:$0xff]
        %v264 = vld [vmem:[%s208 + $0x68] sm:$0xff]
        %v265 = vld [vmem:[%s208 + $0x70] sm:$0xff]
        %v266 = vld [vmem:[%s208 + $0x78] sm:$0xff]
        %v267 = vlaneseq
        %v268 = vand.u32 %v267, 127
        %v269 = vadd.s32 %v268, 128
        %270 = vset.pattern.permute.xlu0 0
        %271 = vperm.xlu0 %270, %v251
        %v272 = vpop.permute.xlu0 %271
        %273 = vset.pattern.permute.xlu0 0
        %274 = vperm.xlu0 %273, %v252
        %v275 = vpop.permute.xlu0 %274
        %276 = vset.pattern.permute.xlu0 0
        %277 = vperm.xlu0 %276, %v253
        %v278 = vpop.permute.xlu0 %277
        %279 = vset.pattern.permute.xlu0 0
        %280 = vperm.xlu0 %279, %v254
        %v281 = vpop.permute.xlu0 %280
        %282 = vset.pattern.permute.xlu0 0
        %283 = vperm.xlu0 %282, %v255
        %v284 = vpop.permute.xlu0 %283
        %285 = vset.pattern.permute.xlu0 0
        %286 = vperm.xlu0 %285, %v256
        %v287 = vpop.permute.xlu0 %286
        %288 = vset.pattern.permute.xlu0 0
        %289 = vperm.xlu0 %288, %v257
        %v290 = vpop.permute.xlu0 %289
        %291 = vset.pattern.permute.xlu0 0
        %292 = vperm.xlu0 %291, %v258
        %v293 = vpop.permute.xlu0 %292
        %294 = vset.pattern.permute.xlu0 0
        %295 = vperm.xlu0 %294, %v259
        %v296 = vpop.permute.xlu0 %295
        %297 = vset.pattern.permute.xlu0 0
        %298 = vperm.xlu0 %297, %v260
        %v299 = vpop.permute.xlu0 %298
        %300 = vset.pattern.permute.xlu0 0
        %301 = vperm.xlu0 %300, %v261
        %v302 = vpop.permute.xlu0 %301
        %303 = vset.pattern.permute.xlu0 0
        %304 = vperm.xlu0 %303, %v262
        %v305 = vpop.permute.xlu0 %304
        %306 = vset.pattern.permute.xlu0 0
        %307 = vperm.xlu0 %306, %v263
        %v308 = vpop.permute.xlu0 %307
        %309 = vset.pattern.permute.xlu0 0
        %310 = vperm.xlu0 %309, %v264
        %v311 = vpop.permute.xlu0 %310
        %312 = vset.pattern.permute.xlu0 0
        %313 = vperm.xlu0 %312, %v265
        %v314 = vpop.permute.xlu0 %313
        %315 = vset.pattern.permute.xlu0 0
        %316 = vperm.xlu0 %315, %v266
        %v317 = vpop.permute.xlu0 %316
        %vm318 = vcmp.eq.s32.totalorder %v268, %v272
        %vm319 = vcmp.eq.s32.totalorder %v269, %v272
        %vm320 = vcmp.eq.s32.totalorder %v268, %v275
        %vm321 = vcmp.eq.s32.totalorder %v269, %v275
        %vm322 = vcmp.eq.s32.totalorder %v268, %v278
        %vm323 = vcmp.eq.s32.totalorder %v269, %v278
        %vm324 = vcmp.eq.s32.totalorder %v268, %v281
        %vm325 = vcmp.eq.s32.totalorder %v269, %v281
        %vm326 = vcmp.eq.s32.totalorder %v268, %v284
        %vm327 = vcmp.eq.s32.totalorder %v269, %v284
        %vm328 = vcmp.eq.s32.totalorder %v268, %v287
        %vm329 = vcmp.eq.s32.totalorder %v269, %v287
        %vm330 = vcmp.eq.s32.totalorder %v268, %v290
        %vm331 = vcmp.eq.s32.totalorder %v269, %v290
        %vm332 = vcmp.eq.s32.totalorder %v268, %v293
        %vm333 = vcmp.eq.s32.totalorder %v269, %v293
        %vm334 = vcmp.eq.s32.totalorder %v268, %v296
        %vm335 = vcmp.eq.s32.totalorder %v269, %v296
        %vm336 = vcmp.eq.s32.totalorder %v268, %v299
        %vm337 = vcmp.eq.s32.totalorder %v269, %v299
        %vm338 = vcmp.eq.s32.totalorder %v268, %v302
        %vm339 = vcmp.eq.s32.totalorder %v269, %v302
        %vm340 = vcmp.eq.s32.totalorder %v268, %v305
        %vm341 = vcmp.eq.s32.totalorder %v269, %v305
        %vm342 = vcmp.eq.s32.totalorder %v268, %v308
        %vm343 = vcmp.eq.s32.totalorder %v269, %v308
        %vm344 = vcmp.eq.s32.totalorder %v268, %v311
        %vm345 = vcmp.eq.s32.totalorder %v269, %v311
        %vm346 = vcmp.eq.s32.totalorder %v268, %v314
        %vm347 = vcmp.eq.s32.totalorder %v269, %v314
        %vm348 = vcmp.eq.s32.totalorder %v268, %v317
        %vm349 = vcmp.eq.s32.totalorder %v269, %v317
        %v350 = vmax.f32 %v219, %v220
        %351 = vmax.xlane.f32.xlu0 %v350
        %v352 = vpop.xlane.xlu0 %351
        %v353 = vmax.f32 %v221, %v222
        %354 = vmax.xlane.f32.xlu0 %v353
        %v355 = vpop.xlane.xlu0 %354
        %v356 = vmax.f32 %v223, %v224
        %357 = vmax.xlane.f32.xlu0 %v356
        %v358 = vpop.xlane.xlu0 %357
        %v359 = vmax.f32 %v225, %v226
        %360 = vmax.xlane.f32.xlu0 %v359
        %v361 = vpop.xlane.xlu0 %360
        %v362 = vmax.f32 %v227, %v228
        %363 = vmax.xlane.f32.xlu0 %v362
        %v364 = vpop.xlane.xlu0 %363
        %v365 = vmax.f32 %v229, %v230
        %366 = vmax.xlane.f32.xlu0 %v365
        %v367 = vpop.xlane.xlu0 %366
        %v368 = vmax.f32 %v231, %v232
        %369 = vmax.xlane.f32.xlu0 %v368
        %v370 = vpop.xlane.xlu0 %369
        %v371 = vmax.f32 %v233, %v234
        %372 = vmax.xlane.f32.xlu0 %v371
        %v373 = vpop.xlane.xlu0 %372
        %v374 = vmax.f32 %v235, %v236
        %375 = vmax.xlane.f32.xlu0 %v374
        %v376 = vpop.xlane.xlu0 %375
        %v377 = vmax.f32 %v237, %v238
        %378 = vmax.xlane.f32.xlu0 %v377
        %v379 = vpop.xlane.xlu0 %378
        %v380 = vmax.f32 %v239, %v240
        %381 = vmax.xlane.f32.xlu0 %v380
        %v382 = vpop.xlane.xlu0 %381
        %v383 = vmax.f32 %v241, %v242
        %384 = vmax.xlane.f32.xlu0 %v383
        %v385 = vpop.xlane.xlu0 %384
        %v386 = vmax.f32 %v243, %v244
        %387 = vmax.xlane.f32.xlu0 %v386
        %v388 = vpop.xlane.xlu0 %387
        %v389 = vmax.f32 %v245, %v246
        %390 = vmax.xlane.f32.xlu0 %v389
        %v391 = vpop.xlane.xlu0 %390
        %v392 = vmax.f32 %v247, %v248
        %393 = vmax.xlane.f32.xlu0 %v392
        %v394 = vpop.xlane.xlu0 %393
        %v395 = vmax.f32 %v249, %v250
        %396 = vmax.xlane.f32.xlu0 %v395
        %v397 = vpop.xlane.xlu0 %396
        %v398 = vsel %vm318, %v219, -inf
        %v399 = vsel %vm319, %v220, -inf
        %v400 = vsel %vm320, %v221, -inf
        %v401 = vsel %vm321, %v222, -inf
        %v402 = vsel %vm322, %v223, -inf
        %v403 = vsel %vm323, %v224, -inf
        %v404 = vsel %vm324, %v225, -inf
        %v405 = vsel %vm325, %v226, -inf
        %v406 = vsel %vm326, %v227, -inf
        %v407 = vsel %vm327, %v228, -inf
        %v408 = vsel %vm328, %v229, -inf
        %v409 = vsel %vm329, %v230, -inf
        %v410 = vsel %vm330, %v231, -inf
        %v411 = vsel %vm331, %v232, -inf
        %v412 = vsel %vm332, %v233, -inf
        %v413 = vsel %vm333, %v234, -inf
        %v414 = vsel %vm334, %v235, -inf
        %v415 = vsel %vm335, %v236, -inf
        %v416 = vsel %vm336, %v237, -inf
        %v417 = vsel %vm337, %v238, -inf
        %v418 = vsel %vm338, %v239, -inf
        %v419 = vsel %vm339, %v240, -inf
        %v420 = vsel %vm340, %v241, -inf
        %v421 = vsel %vm341, %v242, -inf
        %v422 = vsel %vm342, %v243, -inf
        %v423 = vsel %vm343, %v244, -inf
        %v424 = vsel %vm344, %v245, -inf
        %v425 = vsel %vm345, %v246, -inf
        %v426 = vsel %vm346, %v247, -inf
        %v427 = vsel %vm347, %v248, -inf
        %v428 = vsel %vm348, %v249, -inf
        %v429 = vsel %vm349, %v250, -inf
        %v430 = vmax.f32 %v398, %v399
        %431 = vmax.xlane.f32.xlu0 %v430
        %v432 = vpop.xlane.xlu0 %431
        %v433 = vmax.f32 %v400, %v401
        %434 = vmax.xlane.f32.xlu0 %v433
        %v435 = vpop.xlane.xlu0 %434
        %v436 = vmax.f32 %v402, %v403
        %437 = vmax.xlane.f32.xlu0 %v436
        %v438 = vpop.xlane.xlu0 %437
        %v439 = vmax.f32 %v404, %v405
        %440 = vmax.xlane.f32.xlu0 %v439
        %v441 = vpop.xlane.xlu0 %440
        %v442 = vmax.f32 %v406, %v407
        %443 = vmax.xlane.f32.xlu0 %v442
        %v444 = vpop.xlane.xlu0 %443
        %v445 = vmax.f32 %v408, %v409
        %446 = vmax.xlane.f32.xlu0 %v445
        %v447 = vpop.xlane.xlu0 %446
        %v448 = vmax.f32 %v410, %v411
        %449 = vmax.xlane.f32.xlu0 %v448
        %v450 = vpop.xlane.xlu0 %449
        %v451 = vmax.f32 %v412, %v413
        %452 = vmax.xlane.f32.xlu0 %v451
        %v453 = vpop.xlane.xlu0 %452
        %v454 = vmax.f32 %v414, %v415
        %455 = vmax.xlane.f32.xlu0 %v454
        %v456 = vpop.xlane.xlu0 %455
        %v457 = vmax.f32 %v416, %v417
        %458 = vmax.xlane.f32.xlu0 %v457
        %v459 = vpop.xlane.xlu0 %458
        %v460 = vmax.f32 %v418, %v419
        %461 = vmax.xlane.f32.xlu0 %v460
        %v462 = vpop.xlane.xlu0 %461
        %v463 = vmax.f32 %v420, %v421
        %464 = vmax.xlane.f32.xlu0 %v463
        %v465 = vpop.xlane.xlu0 %464
        %v466 = vmax.f32 %v422, %v423
        %467 = vmax.xlane.f32.xlu0 %v466
        %v468 = vpop.xlane.xlu0 %467
        %v469 = vmax.f32 %v424, %v425
        %470 = vmax.xlane.f32.xlu0 %v469
        %v471 = vpop.xlane.xlu0 %470
        %v472 = vmax.f32 %v426, %v427
        %473 = vmax.xlane.f32.xlu0 %v472
        %v474 = vpop.xlane.xlu0 %473
        %v475 = vmax.f32 %v428, %v429
        %476 = vmax.xlane.f32.xlu0 %v475
        %v477 = vpop.xlane.xlu0 %476
        %v478 = vsub.f32 %v219, %v352
        %v479 = vsub.f32 %v220, %v352
        %v480 = vsub.f32 %v221, %v355
        %v481 = vsub.f32 %v222, %v355
        %v482 = vsub.f32 %v223, %v358
        %v483 = vsub.f32 %v224, %v358
        %v484 = vsub.f32 %v225, %v361
        %v485 = vsub.f32 %v226, %v361
        %v486 = vsub.f32 %v227, %v364
        %v487 = vsub.f32 %v228, %v364
        %v488 = vsub.f32 %v229, %v367
        %v489 = vsub.f32 %v230, %v367
        %v490 = vsub.f32 %v231, %v370
        %v491 = vsub.f32 %v232, %v370
        %v492 = vsub.f32 %v233, %v373
        %v493 = vsub.f32 %v234, %v373
        %v494 = vsub.f32 %v235, %v376
        %v495 = vsub.f32 %v236, %v376
        %v496 = vsub.f32 %v237, %v379
        %v497 = vsub.f32 %v238, %v379
        %v498 = vsub.f32 %v239, %v382
        %v499 = vsub.f32 %v240, %v382
        %v500 = vsub.f32 %v241, %v385
        %v501 = vsub.f32 %v242, %v385
        %v502 = vsub.f32 %v243, %v388
        %v503 = vsub.f32 %v244, %v388
        %v504 = vsub.f32 %v245, %v391
        %v505 = vsub.f32 %v246, %v391
        %v506 = vsub.f32 %v247, %v394
        %v507 = vsub.f32 %v248, %v394
        %v508 = vsub.f32 %v249, %v397
        %v509 = vsub.f32 %v250, %v397
        %v510 = vmul.f32 %v478, 1.442695
        %v511 = vpow.pop %v510
        %v512 = vmul.f32 %v479, 1.442695
        %v513 = vpow.pop %v512
        %v514 = vmul.f32 %v480, 1.442695
        %v515 = vpow.pop %v514
        %v516 = vmul.f32 %v481, 1.442695
        %v517 = vpow.pop %v516
        %v518 = vmul.f32 %v482, 1.442695
        %v519 = vpow.pop %v518
        %v520 = vmul.f32 %v483, 1.442695
        %v521 = vpow.pop %v520
        %v522 = vmul.f32 %v484, 1.442695
        %v523 = vpow.pop %v522
        %v524 = vmul.f32 %v485, 1.442695
        %v525 = vpow.pop %v524
        %v526 = vmul.f32 %v486, 1.442695
        %v527 = vpow.pop %v526
        %v528 = vmul.f32 %v487, 1.442695
        %v529 = vpow.pop %v528
        %v530 = vmul.f32 %v488, 1.442695
        %v531 = vpow.pop %v530
        %v532 = vmul.f32 %v489, 1.442695
        %v533 = vpow.pop %v532
        %v534 = vmul.f32 %v490, 1.442695
        %v535 = vpow.pop %v534
        %v536 = vmul.f32 %v491, 1.442695
        %v537 = vpow.pop %v536
        %v538 = vmul.f32 %v492, 1.442695
        %v539 = vpow.pop %v538
        %v540 = vmul.f32 %v493, 1.442695
        %v541 = vpow.pop %v540
        %v542 = vmul.f32 %v494, 1.442695
        %v543 = vpow.pop %v542
        %v544 = vmul.f32 %v495, 1.442695
        %v545 = vpow.pop %v544
        %v546 = vmul.f32 %v496, 1.442695
        %v547 = vpow.pop %v546
        %v548 = vmul.f32 %v497, 1.442695
        %v549 = vpow.pop %v548
        %v550 = vmul.f32 %v498, 1.442695
        %v551 = vpow.pop %v550
        %v552 = vmul.f32 %v499, 1.442695
        %v553 = vpow.pop %v552
        %v554 = vmul.f32 %v500, 1.442695
        %v555 = vpow.pop %v554
        %v556 = vmul.f32 %v501, 1.442695
        %v557 = vpow.pop %v556
        %v558 = vmul.f32 %v502, 1.442695
        %v559 = vpow.pop %v558
        %v560 = vmul.f32 %v503, 1.442695
        %v561 = vpow.pop %v560
        %v562 = vmul.f32 %v504, 1.442695
        %v563 = vpow.pop %v562
        %v564 = vmul.f32 %v505, 1.442695
        %v565 = vpow.pop %v564
        %v566 = vmul.f32 %v506, 1.442695
        %v567 = vpow.pop %v566
        %v568 = vmul.f32 %v507, 1.442695
        %v569 = vpow.pop %v568
        %v570 = vmul.f32 %v508, 1.442695
        %v571 = vpow.pop %v570
        %v572 = vmul.f32 %v509, 1.442695
        %v573 = vpow.pop %v572
        %v574 = vadd.f32 %v511, %v513
        %575 = vadd.xlane.f32.xlu0 %v574
        %v576 = vpop.xlane.xlu0 %575
        %v577 = vadd.f32 %v515, %v517
        %578 = vadd.xlane.f32.xlu0 %v577
        %v579 = vpop.xlane.xlu0 %578
        %v580 = vadd.f32 %v519, %v521
        %581 = vadd.xlane.f32.xlu0 %v580
        %v582 = vpop.xlane.xlu0 %581
        %v583 = vadd.f32 %v523, %v525
        %584 = vadd.xlane.f32.xlu0 %v583
        %v585 = vpop.xlane.xlu0 %584
        %v586 = vadd.f32 %v527, %v529
        %587 = vadd.xlane.f32.xlu0 %v586
        %v588 = vpop.xlane.xlu0 %587
        %v589 = vadd.f32 %v531, %v533
        %590 = vadd.xlane.f32.xlu0 %v589
        %v591 = vpop.xlane.xlu0 %590
        %v592 = vadd.f32 %v535, %v537
        %593 = vadd.xlane.f32.xlu0 %v592
        %v594 = vpop.xlane.xlu0 %593
        %v595 = vadd.f32 %v539, %v541
        %596 = vadd.xlane.f32.xlu0 %v595
        %v597 = vpop.xlane.xlu0 %596
        %v598 = vadd.f32 %v543, %v545
        %599 = vadd.xlane.f32.xlu0 %v598
        %v600 = vpop.xlane.xlu0 %599
        %v601 = vadd.f32 %v547, %v549
        %602 = vadd.xlane.f32.xlu0 %v601
        %v603 = vpop.xlane.xlu0 %602
        %v604 = vadd.f32 %v551, %v553
        %605 = vadd.xlane.f32.xlu0 %v604
        %v606 = vpop.xlane.xlu0 %605
        %v607 = vadd.f32 %v555, %v557
        %608 = vadd.xlane.f32.xlu0 %v607
        %v609 = vpop.xlane.xlu0 %608
        %v610 = vadd.f32 %v559, %v561
        %611 = vadd.xlane.f32.xlu0 %v610
        %v612 = vpop.xlane.xlu0 %611
        %v613 = vadd.f32 %v563, %v565
        %614 = vadd.xlane.f32.xlu0 %v613
        %v615 = vpop.xlane.xlu0 %614
        %v616 = vadd.f32 %v567, %v569
        %617 = vadd.xlane.f32.xlu0 %v616
        %v618 = vpop.xlane.xlu0 %617
        %v619 = vadd.f32 %v571, %v573
        %620 = vadd.xlane.f32.xlu0 %v619
        %v621 = vpop.xlane.xlu0 %620
        %v622 = vsub.f32 %v432, %v352
        %v623 = vsub.f32 %v435, %v355
        %v624 = vsub.f32 %v438, %v358
        %v625 = vsub.f32 %v441, %v361
        %v626 = vsub.f32 %v444, %v364
        %v627 = vsub.f32 %v447, %v367
        %v628 = vsub.f32 %v450, %v370
        %v629 = vsub.f32 %v453, %v373
        %v630 = vsub.f32 %v456, %v376
        %v631 = vsub.f32 %v459, %v379
        %v632 = vsub.f32 %v462, %v382
        %v633 = vsub.f32 %v465, %v385
        %v634 = vsub.f32 %v468, %v388
        %v635 = vsub.f32 %v471, %v391
        %v636 = vsub.f32 %v474, %v394
        %v637 = vsub.f32 %v477, %v397
        %v638 = vmul.f32 %v622, 1.442695
        %v639 = vpow.pop %v638
        %v640 = vmul.f32 %v623, 1.442695
        %v641 = vpow.pop %v640
        %v642 = vmul.f32 %v624, 1.442695
        %v643 = vpow.pop %v642
        %v644 = vmul.f32 %v625, 1.442695
        %v645 = vpow.pop %v644
        %v646 = vmul.f32 %v626, 1.442695
        %v647 = vpow.pop %v646
        %v648 = vmul.f32 %v627, 1.442695
        %v649 = vpow.pop %v648
        %v650 = vmul.f32 %v628, 1.442695
        %v651 = vpow.pop %v650
        %v652 = vmul.f32 %v629, 1.442695
        %v653 = vpow.pop %v652
        %v654 = vmul.f32 %v630, 1.442695
        %v655 = vpow.pop %v654
        %v656 = vmul.f32 %v631, 1.442695
        %v657 = vpow.pop %v656
        %v658 = vmul.f32 %v632, 1.442695
        %v659 = vpow.pop %v658
        %v660 = vmul.f32 %v633, 1.442695
        %v661 = vpow.pop %v660
        %v662 = vmul.f32 %v634, 1.442695
        %v663 = vpow.pop %v662
        %v664 = vmul.f32 %v635, 1.442695
        %v665 = vpow.pop %v664
        %v666 = vmul.f32 %v636, 1.442695
        %v667 = vpow.pop %v666
        %v668 = vmul.f32 %v637, 1.442695
        %v669 = vpow.pop %v668
        %v670 = vrcp.pop %v576
        %v671 = vmul.f32 %v639, %v670
        %v672 = vrcp.pop %v579
        %v673 = vmul.f32 %v641, %v672
        %v674 = vrcp.pop %v582
        %v675 = vmul.f32 %v643, %v674
        %v676 = vrcp.pop %v585
        %v677 = vmul.f32 %v645, %v676
        %v678 = vrcp.pop %v588
        %v679 = vmul.f32 %v647, %v678
        %v680 = vrcp.pop %v591
        %v681 = vmul.f32 %v649, %v680
        %v682 = vrcp.pop %v594
        %v683 = vmul.f32 %v651, %v682
        %v684 = vrcp.pop %v597
        %v685 = vmul.f32 %v653, %v684
        %v686 = vrcp.pop %v600
        %v687 = vmul.f32 %v655, %v686
        %v688 = vrcp.pop %v603
        %v689 = vmul.f32 %v657, %v688
        %v690 = vrcp.pop %v606
        %v691 = vmul.f32 %v659, %v690
        %v692 = vrcp.pop %v609
        %v693 = vmul.f32 %v661, %v692
        %v694 = vrcp.pop %v612
        %v695 = vmul.f32 %v663, %v694
        %v696 = vrcp.pop %v615
        %v697 = vmul.f32 %v665, %v696
        %v698 = vrcp.pop %v618
        %v699 = vmul.f32 %v667, %v698
        %v700 = vrcp.pop %v621
        %v701 = vmul.f32 %v669, %v700
        %v702 = vmax.f32 %v671, 0.0
        %v703 = vmax.f32 %v673, 0.0
        %v704 = vmax.f32 %v675, 0.0
        %v705 = vmax.f32 %v677, 0.0
        %v706 = vmax.f32 %v679, 0.0
        %v707 = vmax.f32 %v681, 0.0
        %v708 = vmax.f32 %v683, 0.0
        %v709 = vmax.f32 %v685, 0.0
        %v710 = vmax.f32 %v687, 0.0
        %v711 = vmax.f32 %v689, 0.0
        %v712 = vmax.f32 %v691, 0.0
        %v713 = vmax.f32 %v693, 0.0
        %v714 = vmax.f32 %v695, 0.0
        %v715 = vmax.f32 %v697, 0.0
        %v716 = vmax.f32 %v699, 0.0
        %v717 = vmax.f32 %v701, 0.0
        %v718 = vmin.f32 %v702, 0.99
        %v719 = vmin.f32 %v703, 0.99
        %v720 = vmin.f32 %v704, 0.99
        %v721 = vmin.f32 %v705, 0.99
        %v722 = vmin.f32 %v706, 0.99
        %v723 = vmin.f32 %v707, 0.99
        %v724 = vmin.f32 %v708, 0.99
        %v725 = vmin.f32 %v709, 0.99
        %v726 = vmin.f32 %v710, 0.99
        %v727 = vmin.f32 %v711, 0.99
        %v728 = vmin.f32 %v712, 0.99
        %v729 = vmin.f32 %v713, 0.99
        %v730 = vmin.f32 %v714, 0.99
        %v731 = vmin.f32 %v715, 0.99
        %v732 = vmin.f32 %v716, 0.99
        %v733 = vmin.f32 %v717, 0.99
        %v734 = vsub.f32 1.0, %v718
        %v735 = vsub.f32 1.0, %v719
        %v736 = vsub.f32 1.0, %v720
        %v737 = vsub.f32 1.0, %v721
        %v738 = vsub.f32 1.0, %v722
        %v739 = vsub.f32 1.0, %v723
        %v740 = vsub.f32 1.0, %v724
        %v741 = vsub.f32 1.0, %v725
        %v742 = vsub.f32 1.0, %v726
        %v743 = vsub.f32 1.0, %v727
        %v744 = vsub.f32 1.0, %v728
        %v745 = vsub.f32 1.0, %v729
        %v746 = vsub.f32 1.0, %v730
        %v747 = vsub.f32 1.0, %v731
        %v748 = vsub.f32 1.0, %v732
        %v749 = vsub.f32 1.0, %v733
        %v750 = vlog2.pop %v734
        %v751 = vmul.f32 %v750, 0.6931472
        %v752 = vlog2.pop %v735
        %v753 = vmul.f32 %v752, 0.6931472
        %v754 = vlog2.pop %v736
        %v755 = vmul.f32 %v754, 0.6931472
        %v756 = vlog2.pop %v737
        %v757 = vmul.f32 %v756, 0.6931472
        %v758 = vlog2.pop %v738
        %v759 = vmul.f32 %v758, 0.6931472
        %v760 = vlog2.pop %v739
        %v761 = vmul.f32 %v760, 0.6931472
        %v762 = vlog2.pop %v740
        %v763 = vmul.f32 %v762, 0.6931472
        %v764 = vlog2.pop %v741
        %v765 = vmul.f32 %v764, 0.6931472
        %v766 = vlog2.pop %v742
        %v767 = vmul.f32 %v766, 0.6931472
        %v768 = vlog2.pop %v743
        %v769 = vmul.f32 %v768, 0.6931472
        %v770 = vlog2.pop %v744
        %v771 = vmul.f32 %v770, 0.6931472
        %v772 = vlog2.pop %v745
        %v773 = vmul.f32 %v772, 0.6931472
        %v774 = vlog2.pop %v746
        %v775 = vmul.f32 %v774, 0.6931472
        %v776 = vlog2.pop %v747
        %v777 = vmul.f32 %v776, 0.6931472
        %v778 = vlog2.pop %v748
        %v779 = vmul.f32 %v778, 0.6931472
        %v780 = vlog2.pop %v749
        %v781 = vmul.f32 %v780, 0.6931472
        %v782 = vsub.f32 0.0, %v751
        %v783 = vsub.f32 0.0, %v753
        %v784 = vsub.f32 0.0, %v755
        %v785 = vsub.f32 0.0, %v757
        %v786 = vsub.f32 0.0, %v759
        %v787 = vsub.f32 0.0, %v761
        %v788 = vsub.f32 0.0, %v763
        %v789 = vsub.f32 0.0, %v765
        %v790 = vsub.f32 0.0, %v767
        %v791 = vsub.f32 0.0, %v769
        %v792 = vsub.f32 0.0, %v771
        %v793 = vsub.f32 0.0, %v773
        %v794 = vsub.f32 0.0, %v775
        %v795 = vsub.f32 0.0, %v777
        %v796 = vsub.f32 0.0, %v779
        %v797 = vsub.f32 0.0, %v781
        %v798 = vmax.f32 %v782, 0.0
        %v799 = vmax.f32 %v783, 0.0
        %v800 = vmax.f32 %v784, 0.0
        %v801 = vmax.f32 %v785, 0.0
        %v802 = vmax.f32 %v786, 0.0
        %v803 = vmax.f32 %v787, 0.0
        %v804 = vmax.f32 %v788, 0.0
        %v805 = vmax.f32 %v789, 0.0
        %v806 = vmax.f32 %v790, 0.0
        %v807 = vmax.f32 %v791, 0.0
        %v808 = vmax.f32 %v792, 0.0
        %v809 = vmax.f32 %v793, 0.0
        %v810 = vmax.f32 %v794, 0.0
        %v811 = vmax.f32 %v795, 0.0
        %v812 = vmax.f32 %v796, 0.0
        %v813 = vmax.f32 %v797, 0.0
        %v814 = vmin.f32 %v798, 10.0
        %v815 = vmin.f32 %v799, 10.0
        %v816 = vmin.f32 %v800, 10.0
        %v817 = vmin.f32 %v801, 10.0
        %v818 = vmin.f32 %v802, 10.0
        %v819 = vmin.f32 %v803, 10.0
        %v820 = vmin.f32 %v804, 10.0
        %v821 = vmin.f32 %v805, 10.0
        %v822 = vmin.f32 %v806, 10.0
        %v823 = vmin.f32 %v807, 10.0
        %v824 = vmin.f32 %v808, 10.0
        %v825 = vmin.f32 %v809, 10.0
        %v826 = vmin.f32 %v810, 10.0
        %v827 = vmin.f32 %v811, 10.0
        %v828 = vmin.f32 %v812, 10.0
        %v829 = vmin.f32 %v813, 10.0
        %vm830 = vcmask 7168
        %831 = vst.msk [vmem:[%s193] sm:$0xff] %vm830, %v814
        %832 = vst.msk [vmem:[%s193 + $0x8] sm:$0xff] %vm830, %v815
        %833 = vst.msk [vmem:[%s193 + $0x10] sm:$0xff] %vm830, %v816
        %834 = vst.msk [vmem:[%s193 + $0x18] sm:$0xff] %vm830, %v817
        %835 = vst.msk [vmem:[%s193 + $0x20] sm:$0xff] %vm830, %v818
        %836 = vst.msk [vmem:[%s193 + $0x28] sm:$0xff] %vm830, %v819
        %837 = vst.msk [vmem:[%s193 + $0x30] sm:$0xff] %vm830, %v820
        %838 = vst.msk [vmem:[%s193 + $0x38] sm:$0xff] %vm830, %v821
        %839 = vst.msk [vmem:[%s193 + $0x40] sm:$0xff] %vm830, %v822
        %840 = vst.msk [vmem:[%s193 + $0x48] sm:$0xff] %vm830, %v823
        %841 = vst.msk [vmem:[%s193 + $0x50] sm:$0xff] %vm830, %v824
        %842 = vst.msk [vmem:[%s193 + $0x58] sm:$0xff] %vm830, %v825
        %843 = vst.msk [vmem:[%s193 + $0x60] sm:$0xff] %vm830, %v826
        %844 = vst.msk [vmem:[%s193 + $0x68] sm:$0xff] %vm830, %v827
        %845 = vst.msk [vmem:[%s193 + $0x70] sm:$0xff] %vm830, %v828
        %846 = vst.msk [vmem:[%s193 + $0x78] sm:$0xff] %vm830, %v829
        %s847 = sand.u32 %s76, 1
        %s848 = sand.u32 %s76, 1
        %s849 = smul.addr %s848, 128
        %s850 = scalar_lea.vmem [#allocation4], %s849
        // Predicated region
        $region33: #{tpu_custom_call.1} parent=27 // pred_check
          %p851 = pneg %p86
        $region34: #{tpu_custom_call.1} parent=27 // pred_check_branch
          %853 = sbr.rel (%p851) target = $region36
        $region35: #{tpu_custom_call.1} parent=27 // pred_region
          %s854 = smul.u32 16, %s16
          %s855 = ssub.s32 38, %s854
          %p856 = scmp.lt.s32.totalorder %s855, 16
          %s857 = scalar_select %p856, %s855, 16
          %s858 = smul.u32 128, %s857
          %p859 = scmp.ne.s32.totalorder 0, %s858
          %s860 = smul.addr %s854, 8
          %s861 = scalar_lea.vmem %s2, %s860
          // Predicated region
          $region37: #{tpu_custom_call.1} parent=35 // pred_check
            %p862 = pneg %p859
          $region38: #{tpu_custom_call.1} parent=35 // pred_check_branch
            %864 = sbr.rel (%p862) target = $region40
          $region39: #{tpu_custom_call.1} parent=35 // pred_region
            // Predicated region
            $region41: #{tpu_custom_call.1} parent=39 // pred_check
              _
            $region42: #{tpu_custom_call.1} parent=39 // pred_check_branch
              %866 = sbr.rel (0) target = $region44
            $region43: #{tpu_custom_call.1} parent=39 // pred_region
              // Predicated region
              $region63: #{tpu_custom_call.1} parent=43 // pred_check
                _
              $region64: #{tpu_custom_call.1} parent=43 // pred_check_branch
                %946 = sbr.rel (0) target = $region66
              $region65: #{tpu_custom_call.1} parent=43 // pred_region
                %s947 = sshrl.u32 %s857, 4
                // While loop
                $region67: #{tpu_custom_call.1} parent=65 // loop_pre_header
                  _
                $region68: #{tpu_custom_call.1} parent=65 // loop_header
                  %s949 = sphi 0, %s951
                  %p950 = scmp.ge.s32.totalorder %s949, %s947
                  %s954 = sphi 0, %s991
                  %s955 = sphi %s850, %s994
                  %s956 = sphi %s861, %s995
                $region69: #{tpu_custom_call.1} parent=65 // loop_header_branch
                  %953 = sbr.rel (%p950) target = $region73
                $region70: #{tpu_custom_call.1} parent=65 // loop_body
                  %v957 = vld [vmem:[%s955] sm:$0xff]
                  %958 = vst [vmem:[%s956] sm:$0xff] %v957
                  %v959 = vld [vmem:[%s955 + $0x8] sm:$0xff]
                  %960 = vst [vmem:[%s956 + $0x8] sm:$0xff] %v959
                  %v961 = vld [vmem:[%s955 + $0x10] sm:$0xff]
                  %962 = vst [vmem:[%s956 + $0x10] sm:$0xff] %v961
                  %v963 = vld [vmem:[%s955 + $0x18] sm:$0xff]
                  %964 = vst [vmem:[%s956 + $0x18] sm:$0xff] %v963
                  %v965 = vld [vmem:[%s955 + $0x20] sm:$0xff]
                  %966 = vst [vmem:[%s956 + $0x20] sm:$0xff] %v965
                  %v967 = vld [vmem:[%s955 + $0x28] sm:$0xff]
                  %968 = vst [vmem:[%s956 + $0x28] sm:$0xff] %v967
                  %v969 = vld [vmem:[%s955 + $0x30] sm:$0xff]
                  %970 = vst [vmem:[%s956 + $0x30] sm:$0xff] %v969
                  %v971 = vld [vmem:[%s955 + $0x38] sm:$0xff]
                  %972 = vst [vmem:[%s956 + $0x38] sm:$0xff] %v971
                  %v973 = vld [vmem:[%s955 + $0x40] sm:$0xff]
                  %974 = vst [vmem:[%s956 + $0x40] sm:$0xff] %v973
                  %v975 = vld [vmem:[%s955 + $0x48] sm:$0xff]
                  %976 = vst [vmem:[%s956 + $0x48] sm:$0xff] %v975
                  %v977 = vld [vmem:[%s955 + $0x50] sm:$0xff]
                  %978 = vst [vmem:[%s956 + $0x50] sm:$0xff] %v977
                  %v979 = vld [vmem:[%s955 + $0x58] sm:$0xff]
                  %980 = vst [vmem:[%s956 + $0x58] sm:$0xff] %v979
                  %v981 = vld [vmem:[%s955 + $0x60] sm:$0xff]
                  %982 = vst [vmem:[%s956 + $0x60] sm:$0xff] %v981
                  %v983 = vld [vmem:[%s955 + $0x68] sm:$0xff]
                  %984 = vst [vmem:[%s956 + $0x68] sm:$0xff] %v983
                  %v985 = vld [vmem:[%s955 + $0x70] sm:$0xff]
                  %986 = vst [vmem:[%s956 + $0x70] sm:$0xff] %v985
                  %v987 = vld [vmem:[%s955 + $0x78] sm:$0xff]
                  %988 = vst [vmem:[%s956 + $0x78] sm:$0xff] %v987
                  %s989 = sadd.s32 1, %s954
                  %p990 = scmp.ge.s32.totalorder %s989, %s947
                  %s991 = scalar_select %p990, 0, %s989
                  %s992 = smul.u32 %s991, 128
                  %s993 = smul.u32 %s991, 128
                  %s994 = scalar_lea.vmem %s850, %s992 [#allocation4]
                  %s995 = scalar_lea.vmem %s861, %s993
                $region71: #{tpu_custom_call.1} parent=65 // loop_footer
                  %s951 = sadd.s32 %s949, 1
                $region72: #{tpu_custom_call.1} parent=65 // loop_footer_branch
                  %948 = sbr.rel target = $region68
                $region73: #{tpu_custom_call.1} parent=65 // loop_exit
                  _
                %s996 = sshrl.u32 %s857, 4
                %s997 = sand.u32 %s857, 15
                %s998 = smul.u32 %s996, 16
                %s999 = smul.u32 8, %s998
                %s1000 = scalar_lea.vmem %s850, %s999 [#allocation4]
                %s1001 = smul.u32 8, %s998
                %s1002 = scalar_lea.vmem %s861, %s1001
                // While loop
                $region74: #{tpu_custom_call.1} parent=65 // loop_pre_header
                  _
                $region75: #{tpu_custom_call.1} parent=65 // loop_header
                  %s1004 = sphi 0, %s1006
                  %p1005 = scmp.ge.s32.totalorder %s1004, %s997
                  %s1009 = sphi 0, %s1016
                  %s1010 = sphi %s1000, %s1019
                  %s1011 = sphi %s1002, %s1020
                $region76: #{tpu_custom_call.1} parent=65 // loop_header_branch
                  %1008 = sbr.rel (%p1005) target = $region80
                $region77: #{tpu_custom_call.1} parent=65 // loop_body
                  %v1012 = vld [vmem:[%s1010] sm:$0xff]
                  %1013 = vst [vmem:[%s1011] sm:$0xff] %v1012
                  %s1014 = sadd.s32 1, %s1009
                  %p1015 = scmp.ge.s32.totalorder %s1014, %s997
                  %s1016 = scalar_select %p1015, 0, %s1014
                  %s1017 = smul.u32 %s1016, 8
                  %s1018 = smul.u32 %s1016, 8
                  %s1019 = scalar_lea.vmem %s1000, %s1017 [#allocation4]
                  %s1020 = scalar_lea.vmem %s1002, %s1018
                $region78: #{tpu_custom_call.1} parent=65 // loop_footer
                  %s1006 = sadd.s32 %s1004, 1
                $region79: #{tpu_custom_call.1} parent=65 // loop_footer_branch
                  %1003 = sbr.rel target = $region75
                $region80: #{tpu_custom_call.1} parent=65 // loop_exit
                  _
              $region66: #{tpu_custom_call.1} parent=43 // pred_fallthru
                _
              // Predicated region
              $region81: #{tpu_custom_call.1} parent=43 // pred_check
                _
              $region82: #{tpu_custom_call.1} parent=43 // pred_check_branch
                %1022 = sbr.rel target = $region84
              $region83: #{tpu_custom_call.1} parent=43 // pred_region
                _
              $region84: #{tpu_custom_call.1} parent=43 // pred_fallthru
                _
            $region44: #{tpu_custom_call.1} parent=39 // pred_fallthru
              _
            // Predicated region
            $region45: #{tpu_custom_call.1} parent=39 // pred_check
              _
            $region46: #{tpu_custom_call.1} parent=39 // pred_check_branch
              %868 = sbr.rel target = $region48
            $region47: #{tpu_custom_call.1} parent=39 // pred_region
              %s870 = ssub.s32 256, 1
              %s871 = sshrl.u32 %s857, 4
              // While loop
              $region49: #{tpu_custom_call.1} parent=47 // loop_pre_header
                _
              $region50: #{tpu_custom_call.1} parent=47 // loop_header
                %s873 = sphi 0, %s875
                %p874 = scmp.ge.s32.totalorder %s873, %s871
                %s878 = sphi 0, %s915
                %s879 = sphi %s850, %s918
                %s880 = sphi %s861, %s919
              $region51: #{tpu_custom_call.1} parent=47 // loop_header_branch
                %877 = sbr.rel (%p874) target = $region55
              $region52: #{tpu_custom_call.1} parent=47 // loop_body
                %v881 = vld [vmem:[%s879] sm:%s870]
                %882 = vst [vmem:[%s880] sm:%s870] %v881
                %v883 = vld [vmem:[%s879 + $0x8] sm:%s870]
                %884 = vst [vmem:[%s880 + $0x8] sm:%s870] %v883
                %v885 = vld [vmem:[%s879 + $0x10] sm:%s870]
                %886 = vst [vmem:[%s880 + $0x10] sm:%s870] %v885
                %v887 = vld [vmem:[%s879 + $0x18] sm:%s870]
                %888 = vst [vmem:[%s880 + $0x18] sm:%s870] %v887
                %v889 = vld [vmem:[%s879 + $0x20] sm:%s870]
                %890 = vst [vmem:[%s880 + $0x20] sm:%s870] %v889
                %v891 = vld [vmem:[%s879 + $0x28] sm:%s870]
                %892 = vst [vmem:[%s880 + $0x28] sm:%s870] %v891
                %v893 = vld [vmem:[%s879 + $0x30] sm:%s870]
                %894 = vst [vmem:[%s880 + $0x30] sm:%s870] %v893
                %v895 = vld [vmem:[%s879 + $0x38] sm:%s870]
                %896 = vst [vmem:[%s880 + $0x38] sm:%s870] %v895
                %v897 = vld [vmem:[%s879 + $0x40] sm:%s870]
                %898 = vst [vmem:[%s880 + $0x40] sm:%s870] %v897
                %v899 = vld [vmem:[%s879 + $0x48] sm:%s870]
                %900 = vst [vmem:[%s880 + $0x48] sm:%s870] %v899
                %v901 = vld [vmem:[%s879 + $0x50] sm:%s870]
                %902 = vst [vmem:[%s880 + $0x50] sm:%s870] %v901
                %v903 = vld [vmem:[%s879 + $0x58] sm:%s870]
                %904 = vst [vmem:[%s880 + $0x58] sm:%s870] %v903
                %v905 = vld [vmem:[%s879 + $0x60] sm:%s870]
                %906 = vst [vmem:[%s880 + $0x60] sm:%s870] %v905
                %v907 = vld [vmem:[%s879 + $0x68] sm:%s870]
                %908 = vst [vmem:[%s880 + $0x68] sm:%s870] %v907
                %v909 = vld [vmem:[%s879 + $0x70] sm:%s870]
                %910 = vst [vmem:[%s880 + $0x70] sm:%s870] %v909
                %v911 = vld [vmem:[%s879 + $0x78] sm:%s870]
                %912 = vst [vmem:[%s880 + $0x78] sm:%s870] %v911
                %s913 = sadd.s32 1, %s878
                %p914 = scmp.ge.s32.totalorder %s913, %s871
                %s915 = scalar_select %p914, 0, %s913
                %s916 = smul.u32 %s915, 128
                %s917 = smul.u32 %s915, 128
                %s918 = scalar_lea.vmem %s850, %s916 [#allocation4]
                %s919 = scalar_lea.vmem %s861, %s917
              $region53: #{tpu_custom_call.1} parent=47 // loop_footer
                %s875 = sadd.s32 %s873, 1
              $region54: #{tpu_custom_call.1} parent=47 // loop_footer_branch
                %872 = sbr.rel target = $region50
              $region55: #{tpu_custom_call.1} parent=47 // loop_exit
                _
              %s920 = sshrl.u32 %s857, 4
              %s921 = sand.u32 %s857, 15
              %s922 = smul.u32 %s920, 16
              %s923 = smul.u32 8, %s922
              %s924 = scalar_lea.vmem %s850, %s923 [#allocation4]
              %s925 = smul.u32 8, %s922
              %s926 = scalar_lea.vmem %s861, %s925
              // While loop
              $region56: #{tpu_custom_call.1} parent=47 // loop_pre_header
                _
              $region57: #{tpu_custom_call.1} parent=47 // loop_header
                %s928 = sphi 0, %s930
                %p929 = scmp.ge.s32.totalorder %s928, %s921
                %s933 = sphi 0, %s940
                %s934 = sphi %s924, %s943
                %s935 = sphi %s926, %s944
              $region58: #{tpu_custom_call.1} parent=47 // loop_header_branch
                %932 = sbr.rel (%p929) target = $region62
              $region59: #{tpu_custom_call.1} parent=47 // loop_body
                %v936 = vld [vmem:[%s934] sm:%s870]
                %937 = vst [vmem:[%s935] sm:%s870] %v936
                %s938 = sadd.s32 1, %s933
                %p939 = scmp.ge.s32.totalorder %s938, %s921
                %s940 = scalar_select %p939, 0, %s938
                %s941 = smul.u32 %s940, 8
                %s942 = smul.u32 %s940, 8
                %s943 = scalar_lea.vmem %s924, %s941 [#allocation4]
                %s944 = scalar_lea.vmem %s926, %s942
              $region60: #{tpu_custom_call.1} parent=47 // loop_footer
                %s930 = sadd.s32 %s928, 1
              $region61: #{tpu_custom_call.1} parent=47 // loop_footer_branch
                %927 = sbr.rel target = $region57
              $region62: #{tpu_custom_call.1} parent=47 // loop_exit
                _
            $region48: #{tpu_custom_call.1} parent=39 // pred_fallthru
              _
          $region40: #{tpu_custom_call.1} parent=35 // pred_fallthru
            _
          %1023 = vnop
        $region36: #{tpu_custom_call.1} parent=27 // pred_fallthru
          _
      $region28: #{tpu_custom_call.1} parent=5 // pred_fallthru
        _
      %p1024 = scmp.le.s32.totalorder 2, %s11
      // Predicated region
      $region85: #{tpu_custom_call.1} parent=5 // pred_check
        %p1025 = pneg %p1024
      $region86: #{tpu_custom_call.1} parent=5 // pred_check_branch
        %1027 = sbr.rel (%p1025) target = $region88
      $region87: #{tpu_custom_call.1} parent=5 // pred_region
        %s1028 = ssub.s32 %s11, 2
        // Predicated region
        $region89: #{tpu_custom_call.1} parent=87 // pred_check
          %p1029 = pneg %p92
        $region90: #{tpu_custom_call.1} parent=87 // pred_check_branch
          %1031 = sbr.rel (%p1029) target = $region92
        $region91: #{tpu_custom_call.1} parent=87 // pred_region
          %s1032 = sand.u32 %s77, 1
          %s1033 = sand.u32 %s77, 1
          %s1034 = smul.addr %s1033, 128
          %s1035 = scalar_lea.vmem [#allocation4], %s1034
        $region92: #{tpu_custom_call.1} parent=87 // pred_fallthru
          _
      $region88: #{tpu_custom_call.1} parent=5 // pred_fallthru
        _
    $region6: #{tpu_custom_call.1} parent=1 // loop_footer
      %s15 = sadd.s32 1, %s11
    $region7: #{tpu_custom_call.1} parent=1 // loop_footer_branch
      %10 = sbr.rel target = $region3
    $region8: #{tpu_custom_call.1} parent=1 // loop_exit
      _
    %1036 = vsyncpa [#allocation3], 1
    %s1037 = scalar_lea.sflag [#allocation3], 1
    %1038 = vsyncpa %s1037, 1

</llo_original>
